<compile_context>
chip_gen: v7x
topology: tpu7x:2x2x1
jax: 0.10.0
libtpu: 0.0.40
codegen_flags: <defaults>
</compile_context>

<pallas_src>
import functools

import jax
import jax.numpy as jnp
from jax.experimental import pallas as pl

LANE = 128
SUBLANE = 8


def _rup(x, m):
    return (x + m - 1) // m * m


def make_layout(s_dim, hidden_dim, hidden_dim_2, n_actions):
    """Static row/column layout of the packed per-head parameter slab."""
    PH = _rup(hidden_dim, LANE)           # padded width of hidden activations
    P2 = _rup(2 * hidden_dim_2, LANE)     # padded width of fused V/A hidden
    PQ = _rup(1 + n_actions, LANE)        # padded width of fused [V, A] output
    L = max(PH, P2, PQ)                   # slab lane width
    o_w1 = 0
    o_w2 = o_w1 + _rup(s_dim, SUBLANE)
    o_w3 = o_w2 + PH
    o_w4 = o_w3 + PH
    o_b = o_w4 + P2
    rows = o_b + SUBLANE
    return dict(PH=PH, P2=P2, PQ=PQ, L=L,
                o_w1=o_w1, o_w2=o_w2, o_w3=o_w3, o_w4=o_w4, o_b=o_b, rows=rows)


def dueling_q_kernel(s_ref, p_ref, q_ref, *, n_heads, s_dim, n_actions, lo):
    """s_ref: (B, nH*S); p_ref: (nH, R, L) packed params; q_ref: (B, nH*PQ)."""
    S = s_dim
    PH, P2, PQ = lo["PH"], lo["P2"], lo["PQ"]
    ob = lo["o_b"]
    inv_na = 1.0 / float(n_actions)

    for h in range(n_heads):                             # static unroll (nH small)
        s_h = s_ref[:, h * S:(h + 1) * S]                # (B, S)

        w1 = p_ref[h, lo["o_w1"]:lo["o_w1"] + S, 0:PH]   # (S,  PH)
        w2 = p_ref[h, lo["o_w2"]:lo["o_w2"] + PH, 0:PH]  # (PH, PH)
        w3 = p_ref[h, lo["o_w3"]:lo["o_w3"] + PH, 0:P2]  # (PH, P2)  [wv1 | wa1]
        w4 = p_ref[h, lo["o_w4"]:lo["o_w4"] + P2, 0:PQ]  # (P2, PQ)  block-diag
        b1 = p_ref[h, ob + 0:ob + 1, 0:PH]               # (1, PH)
        b2 = p_ref[h, ob + 1:ob + 2, 0:PH]
        b3 = p_ref[h, ob + 2:ob + 3, 0:P2]
        b4 = p_ref[h, ob + 3:ob + 4, 0:PQ]

        # common_pipe -> outer relu (zero-padded lanes stay exactly zero)
        x = jnp.maximum(jnp.dot(s_h, w1, preferred_element_type=jnp.float32) + b1, 0.0)
        x = jnp.maximum(jnp.dot(x, w2, preferred_element_type=jnp.float32) + b2, 0.0)

        # fused V/A first layer + relu, then fused block-diagonal second layer:
        # qa[:, 0] = V, qa[:, 1:1+nA] = A, remaining lanes are exactly zero.
        va = jnp.maximum(jnp.dot(x, w3, preferred_element_type=jnp.float32) + b3, 0.0)
        qa = jnp.dot(va, w4, preferred_element_type=jnp.float32) + b4   # (B, PQ)

        V = qa[:, 0:1]
        A_sum = jnp.sum(qa, axis=-1, keepdims=True) - V     # padding lanes are zero
        q_full = qa + (V - A_sum * inv_na)                   # lanes 1:1+nA hold Q

        # lane-dense, 128-aligned full-tile store; wrapper slices lanes 1:1+nA.
        q_ref[:, h * PQ:(h + 1) * PQ] = q_full


def dueling_q_forward(s_bhf, slab, *, s_dim, hidden_dim, hidden_dim_2, n_actions):
    """s_bhf: (B, nH, s_dim) f32 -> Q: (B, nH, n_actions) f32."""
    B, nH, S = s_bhf.shape
    lo = make_layout(s_dim, hidden_dim, hidden_dim_2, n_actions)
    PQ = lo["PQ"]

    s2d = s_bhf.reshape(B, nH * S)        # contiguous reshape, no transpose

    kernel = functools.partial(dueling_q_kernel, n_heads=nH, s_dim=S,
                               n_actions=n_actions, lo=lo)

    q2d = pl.pallas_call(
        kernel,
        out_shape=jax.ShapeDtypeStruct((B, nH * PQ), jnp.float32),
        grid=(1,),  # single invocation; whole problem fits VMEM comfortably
        in_specs=[
            pl.BlockSpec((B, nH * S), lambda i: (0, 0)),
            pl.BlockSpec((nH, lo["rows"], lo["L"]), lambda i: (0, 0, 0)),
        ],
        out_specs=pl.BlockSpec((B, nH * PQ), lambda i: (0, 0)),
    )(s2d, slab)

    # free reshape + slice back to the PyTorch (B, nH, nA) layout
    return q2d.reshape(B, nH, PQ)[:, :, 1:1 + n_actions]


def pack_params(params, *, s_dim, hidden_dim, hidden_dim_2, n_actions):
    """Pack the 12 per-head tensors into one zero-padded (nH, R, L) slab.

    Done once (outside the per-step forward); V/A branches are fused here:
      W3 = [wv1 | wa1], b3 = [bv1 | ba1]
      W4 = block_diag(wv2 -> lane 0, wa2 -> lanes 1:1+nA), b4 = [bv2 | ba2]
    """
    nH = params["w1"].shape[0]
    S, H, H2, nA = s_dim, hidden_dim, hidden_dim_2, n_actions
    lo = make_layout(S, H, H2, nA)
    slab = jnp.zeros((nH, lo["rows"], lo["L"]), jnp.float32)

    slab = slab.at[:, lo["o_w1"]:lo["o_w1"] + S, 0:H].set(params["w1"])
    slab = slab.at[:, lo["o_w2"]:lo["o_w2"] + H, 0:H].set(params["w2"])
    slab = slab.at[:, lo["o_w3"]:lo["o_w3"] + H, 0:H2].set(params["wv1"])
    slab = slab.at[:, lo["o_w3"]:lo["o_w3"] + H, H2:2 * H2].set(params["wa1"])
    slab = slab.at[:, lo["o_w4"]:lo["o_w4"] + H2, 0:1].set(params["wv2"])
    slab = slab.at[:, lo["o_w4"] + H2:lo["o_w4"] + 2 * H2, 1:1 + nA].set(params["wa2"])

    ob = lo["o_b"]
    slab = slab.at[:, ob + 0:ob + 1, 0:H].set(params["b1"])
    slab = slab.at[:, ob + 1:ob + 2, 0:H].set(params["b2"])
    slab = slab.at[:, ob + 2:ob + 3, 0:H2].set(params["bv1"])
    slab = slab.at[:, ob + 2:ob + 3, H2:2 * H2].set(params["ba1"])
    slab = slab.at[:, ob + 3:ob + 4, 0:1].set(params["bv2"])
    slab = slab.at[:, ob + 3:ob + 4, 1:1 + nA].set(params["ba2"])
    return slab


def init_params(key, n_heads, s_dim, hidden_dim, hidden_dim_2, n_actions):
    """Deterministic synthetic init; weights stored as (n_heads, in, out)."""
    def lin(k, fan_in, fan_out):
        kw, kb = jax.random.split(k)
        bound = 1.0 / jnp.sqrt(fan_in)
        w = jax.random.uniform(kw, (n_heads, fan_in, fan_out),
                               jnp.float32, -bound, bound)
        b = jax.random.uniform(kb, (n_heads, 1, fan_out),
                               jnp.float32, -bound, bound)
        return w, b

    keys = jax.random.split(key, 6)
    w1, b1 = lin(keys[0], s_dim, hidden_dim)
    w2, b2 = lin(keys[1], hidden_dim, hidden_dim)
    wv1, bv1 = lin(keys[2], hidden_dim, hidden_dim_2)
    wv2, bv2 = lin(keys[3], hidden_dim_2, 1)
    wa1, ba1 = lin(keys[4], hidden_dim, hidden_dim_2)
    wa2, ba2 = lin(keys[5], hidden_dim_2, n_actions)
    return dict(w1=w1, b1=b1, w2=w2, b2=b2,
                wv1=wv1, bv1=bv1, wv2=wv2, bv2=bv2,
                wa1=wa1, ba1=ba1, wa2=wa2, ba2=ba2)


def reference_forward(s_bhf, params):
    """Pure-JAX reference of the PyTorch forward (for sanity check)."""
    def plin(x, w, b):   # x: (B, nH, in), w: (nH, in, out), b: (nH, 1, out)
        return jnp.einsum("bhi,hio->bho", x, w) + jnp.transpose(b, (1, 0, 2))
    h = jax.nn.relu(plin(s_bhf, params["w1"], params["b1"]))
    x = jax.nn.relu(plin(h, params["w2"], params["b2"]))
    v = jax.nn.relu(plin(x, params["wv1"], params["bv1"]))
    V = plin(v, params["wv2"], params["bv2"])
    a = jax.nn.relu(plin(x, params["wa1"], params["ba1"]))
    A = plin(a, params["wa2"], params["ba2"])
    return V + A - A.mean(-1, keepdims=True)


if __name__ == "__main__":
    # Small shapes consistent with the module (defaults scaled down).
    batch, n_heads = 8, 2
    s_dim, hidden_dim, hidden_dim_2, n_actions = 16, 64, 32, 8

    key = jax.random.PRNGKey(0)
    k_params, k_input = jax.random.split(key)
    params = init_params(k_params, n_heads, s_dim, hidden_dim,
                         hidden_dim_2, n_actions)
    s = jax.random.normal(k_input, (batch, n_heads, s_dim), jnp.float32)

    # Pack once (parameters change far less often than forward calls).
    slab = jax.block_until_ready(
        pack_params(params, s_dim=s_dim, hidden_dim=hidden_dim,
                    hidden_dim_2=hidden_dim_2, n_actions=n_actions))

    q = dueling_q_forward(s, slab, s_dim=s_dim, hidden_dim=hidden_dim,
                          hidden_dim_2=hidden_dim_2, n_actions=n_actions)
    q = jax.block_until_ready(q)

    q_ref = reference_forward(s, params)
    assert q.shape == (batch, n_heads, n_actions)
    assert jnp.allclose(q, q_ref, atol=1e-4, rtol=1e-4)

    # TODO(synk): Adam optimizer / training step and the noisy=True
    # parallel_Linear_noisy branch are out of scope (inference forward only).
    print("KERNEL_OK")
</pallas_src>

<mosaic_0001>
module attributes {stable_mosaic.version = 11 : i64} {
  func.func @dueling_q_kernel(%arg0: i32, %arg1: memref<8x32xf32, #tpu.memory_space<vmem>>, %arg2: memref<2x408x128xf32, #tpu.memory_space<vmem>>, %arg3: memref<8x256xf32, #tpu.memory_space<vmem>>) attributes {dimension_semantics = [#tpu.dimension_semantics<arbitrary>], iteration_bounds = array<i64: 1>, scalar_prefetch = 0 : i64, scratch_operands = 0 : i64, tpu.core_type = #tpu.core_type<tc>, window_params = [{pipeline_mode = #tpu.pipeline_mode<synchronous>, transform_indices = @transform_0, window_bounds = array<i64: 8, 32>}, {pipeline_mode = #tpu.pipeline_mode<synchronous>, transform_indices = @transform_1, window_bounds = array<i64: 2, 408, 128>}, {pipeline_mode = #tpu.pipeline_mode<synchronous>, transform_indices = @transform_2, window_bounds = array<i64: 8, 256>}]} {
    %c0 = arith.constant 0 : index
    %c0_0 = arith.constant 0 : index
    %0 = vector.load %arg1[%c0, %c0_0] : memref<8x32xf32, #tpu.memory_space<vmem>>, vector<8x16xf32>
    %c0_1 = arith.constant 0 : index
    %c0_2 = arith.constant 0 : index
    %c0_3 = arith.constant 0 : index
    %1 = vector.load %arg2[%c0_1, %c0_2, %c0_3] : memref<2x408x128xf32, #tpu.memory_space<vmem>>, vector<1x16x128xf32>
    %2 = vector.shape_cast %1 : vector<1x16x128xf32> to vector<16x128xf32>
    %c0_4 = arith.constant 0 : index
    %c16 = arith.constant 16 : index
    %c0_5 = arith.constant 0 : index
    %3 = vector.load %arg2[%c0_4, %c16, %c0_5] : memref<2x408x128xf32, #tpu.memory_space<vmem>>, vector<1x128x128xf32>
    %4 = vector.shape_cast %3 : vector<1x128x128xf32> to vector<128x128xf32>
    %c0_6 = arith.constant 0 : index
    %c144 = arith.constant 144 : index
    %c0_7 = arith.constant 0 : index
    %5 = vector.load %arg2[%c0_6, %c144, %c0_7] : memref<2x408x128xf32, #tpu.memory_space<vmem>>, vector<1x128x128xf32>
    %6 = vector.shape_cast %5 : vector<1x128x128xf32> to vector<128x128xf32>
    %c0_8 = arith.constant 0 : index
    %c272 = arith.constant 272 : index
    %c0_9 = arith.constant 0 : index
    %7 = vector.load %arg2[%c0_8, %c272, %c0_9] : memref<2x408x128xf32, #tpu.memory_space<vmem>>, vector<1x128x128xf32>
    %8 = vector.shape_cast %7 : vector<1x128x128xf32> to vector<128x128xf32>
    %c0_10 = arith.constant 0 : index
    %c400 = arith.constant 400 : index
    %c0_11 = arith.constant 0 : index
    %9 = vector.load %arg2[%c0_10, %c400, %c0_11] : memref<2x408x128xf32, #tpu.memory_space<vmem>>, vector<1x1x128xf32>
    %10 = vector.shape_cast %9 : vector<1x1x128xf32> to vector<1x128xf32>
    %c0_12 = arith.constant 0 : index
    %c401 = arith.constant 401 : index
    %c0_13 = arith.constant 0 : index
    %11 = vector.load %arg2[%c0_12, %c401, %c0_13] : memref<2x408x128xf32, #tpu.memory_space<vmem>>, vector<1x1x128xf32>
    %12 = vector.shape_cast %11 : vector<1x1x128xf32> to vector<1x128xf32>
    %c0_14 = arith.constant 0 : index
    %c402 = arith.constant 402 : index
    %c0_15 = arith.constant 0 : index
    %13 = vector.load %arg2[%c0_14, %c402, %c0_15] : memref<2x408x128xf32, #tpu.memory_space<vmem>>, vector<1x1x128xf32>
    %14 = vector.shape_cast %13 : vector<1x1x128xf32> to vector<1x128xf32>
    %c0_16 = arith.constant 0 : index
    %c403 = arith.constant 403 : index
    %c0_17 = arith.constant 0 : index
    %15 = vector.load %arg2[%c0_16, %c403, %c0_17] : memref<2x408x128xf32, #tpu.memory_space<vmem>>, vector<1x1x128xf32>
    %16 = vector.shape_cast %15 : vector<1x1x128xf32> to vector<1x128xf32>
    %cst = arith.constant dense<0.000000e+00> : vector<8x128xf32>
    %17 = tpu.matmul %0, %2, %cst {dimension_numbers = #tpu.dot_dimension_numbers<[1], [0], [0], [1], [0, 0, 1, 1], [], []>} : vector<8x16xf32>, vector<16x128xf32>, vector<8x128xf32> -> vector<8x128xf32>
    %18 = vector.broadcast %10 : vector<1x128xf32> to vector<8x128xf32>
    %19 = arith.addf %17, %18 : vector<8x128xf32>
    %cst_18 = arith.constant 0.000000e+00 : f32
    %20 = vector.broadcast %cst_18 : f32 to vector<8x128xf32>
    %21 = arith.maximumf %19, %20 : vector<8x128xf32>
    %cst_19 = arith.constant dense<0.000000e+00> : vector<8x128xf32>
    %22 = tpu.matmul %21, %4, %cst_19 {dimension_numbers = #tpu.dot_dimension_numbers<[1], [0], [0], [1], [0, 0, 1, 1], [], []>} : vector<8x128xf32>, vector<128x128xf32>, vector<8x128xf32> -> vector<8x128xf32>
    %23 = vector.broadcast %12 : vector<1x128xf32> to vector<8x128xf32>
    %24 = arith.addf %22, %23 : vector<8x128xf32>
    %cst_20 = arith.constant 0.000000e+00 : f32
    %25 = vector.broadcast %cst_20 : f32 to vector<8x128xf32>
    %26 = arith.maximumf %24, %25 : vector<8x128xf32>
    %cst_21 = arith.constant dense<0.000000e+00> : vector<8x128xf32>
    %27 = tpu.matmul %26, %6, %cst_21 {dimension_numbers = #tpu.dot_dimension_numbers<[1], [0], [0], [1], [0, 0, 1, 1], [], []>} : vector<8x128xf32>, vector<128x128xf32>, vector<8x128xf32> -> vector<8x128xf32>
    %28 = vector.broadcast %14 : vector<1x128xf32> to vector<8x128xf32>
    %29 = arith.addf %27, %28 : vector<8x128xf32>
    %cst_22 = arith.constant 0.000000e+00 : f32
    %30 = vector.broadcast %cst_22 : f32 to vector<8x128xf32>
    %31 = arith.maximumf %29, %30 : vector<8x128xf32>
    %cst_23 = arith.constant dense<0.000000e+00> : vector<8x128xf32>
    %32 = tpu.matmul %31, %8, %cst_23 {dimension_numbers = #tpu.dot_dimension_numbers<[1], [0], [0], [1], [0, 0, 1, 1], [], []>} : vector<8x128xf32>, vector<128x128xf32>, vector<8x128xf32> -> vector<8x128xf32>
    %33 = vector.broadcast %16 : vector<1x128xf32> to vector<8x128xf32>
    %34 = arith.addf %32, %33 : vector<8x128xf32>
    %35 = vector.extract_strided_slice %34 {offsets = [0, 0], sizes = [8, 1], strides = [1, 1]} : vector<8x128xf32> to vector<8x1xf32>
    %cst_24 = arith.constant dense<0.000000e+00> : vector<8xf32>
    %36 = vector.multi_reduction <add>, %34, %cst_24 [1] : vector<8x128xf32> to vector<8xf32>
    %37 = vector.shape_cast %36 : vector<8xf32> to vector<8x1xf32>
    %38 = arith.subf %37, %35 : vector<8x1xf32>
    %cst_25 = arith.constant 1.250000e-01 : f32
    %39 = vector.broadcast %cst_25 : f32 to vector<8x1xf32>
    %40 = arith.mulf %38, %39 : vector<8x1xf32>
    %41 = arith.subf %35, %40 : vector<8x1xf32>
    %42 = vector.broadcast %41 : vector<8x1xf32> to vector<8x128xf32>
    %43 = arith.addf %34, %42 : vector<8x128xf32>
    %c0_26 = arith.constant 0 : index
    %c0_27 = arith.constant 0 : index
    %44 = vector.load %arg3[%c0_26, %c0_27] : memref<8x256xf32, #tpu.memory_space<vmem>>, vector<8x128xf32>
    tpu.vector_store %arg3[%c0_26, %c0_27], %43 {strides = array<i32>} : memref<8x256xf32, #tpu.memory_space<vmem>>, vector<8x128xf32>,
    %c0_28 = arith.constant 0 : index
    %c16_29 = arith.constant 16 : index
    %45 = vector.load %arg1[%c0_28, %c16_29] : memref<8x32xf32, #tpu.memory_space<vmem>>, vector<8x16xf32>
    %c1 = arith.constant 1 : index
    %c0_30 = arith.constant 0 : index
    %c0_31 = arith.constant 0 : index
    %46 = vector.load %arg2[%c1, %c0_30, %c0_31] : memref<2x408x128xf32, #tpu.memory_space<vmem>>, vector<1x16x128xf32>
    %47 = vector.shape_cast %46 : vector<1x16x128xf32> to vector<16x128xf32>
    %c1_32 = arith.constant 1 : index
    %c16_33 = arith.constant 16 : index
    %c0_34 = arith.constant 0 : index
    %48 = vector.load %arg2[%c1_32, %c16_33, %c0_34] : memref<2x408x128xf32, #tpu.memory_space<vmem>>, vector<1x128x128xf32>
    %49 = vector.shape_cast %48 : vector<1x128x128xf32> to vector<128x128xf32>
    %c1_35 = arith.constant 1 : index
    %c144_36 = arith.constant 144 : index
    %c0_37 = arith.constant 0 : index
    %50 = vector.load %arg2[%c1_35, %c144_36, %c0_37] : memref<2x408x128xf32, #tpu.memory_space<vmem>>, vector<1x128x128xf32>
    %51 = vector.shape_cast %50 : vector<1x128x128xf32> to vector<128x128xf32>
    %c1_38 = arith.constant 1 : index
    %c272_39 = arith.constant 272 : index
    %c0_40 = arith.constant 0 : index
    %52 = vector.load %arg2[%c1_38, %c272_39, %c0_40] : memref<2x408x128xf32, #tpu.memory_space<vmem>>, vector<1x128x128xf32>
    %53 = vector.shape_cast %52 : vector<1x128x128xf32> to vector<128x128xf32>
    %c1_41 = arith.constant 1 : index
    %c400_42 = arith.constant 400 : index
    %c0_43 = arith.constant 0 : index
    %54 = vector.load %arg2[%c1_41, %c400_42, %c0_43] : memref<2x408x128xf32, #tpu.memory_space<vmem>>, vector<1x1x128xf32>
    %55 = vector.shape_cast %54 : vector<1x1x128xf32> to vector<1x128xf32>
    %c1_44 = arith.constant 1 : index
    %c401_45 = arith.constant 401 : index
    %c0_46 = arith.constant 0 : index
    %56 = vector.load %arg2[%c1_44, %c401_45, %c0_46] : memref<2x408x128xf32, #tpu.memory_space<vmem>>, vector<1x1x128xf32>
    %57 = vector.shape_cast %56 : vector<1x1x128xf32> to vector<1x128xf32>
    %c1_47 = arith.constant 1 : index
    %c402_48 = arith.constant 402 : index
    %c0_49 = arith.constant 0 : index
    %58 = vector.load %arg2[%c1_47, %c402_48, %c0_49] : memref<2x408x128xf32, #tpu.memory_space<vmem>>, vector<1x1x128xf32>
    %59 = vector.shape_cast %58 : vector<1x1x128xf32> to vector<1x128xf32>
    %c1_50 = arith.constant 1 : index
    %c403_51 = arith.constant 403 : index
    %c0_52 = arith.constant 0 : index
    %60 = vector.load %arg2[%c1_50, %c403_51, %c0_52] : memref<2x408x128xf32, #tpu.memory_space<vmem>>, vector<1x1x128xf32>
    %61 = vector.shape_cast %60 : vector<1x1x128xf32> to vector<1x128xf32>
    %cst_53 = arith.constant dense<0.000000e+00> : vector<8x128xf32>
    %62 = tpu.matmul %45, %47, %cst_53 {dimension_numbers = #tpu.dot_dimension_numbers<[1], [0], [0], [1], [0, 0, 1, 1], [], []>} : vector<8x16xf32>, vector<16x128xf32>, vector<8x128xf32> -> vector<8x128xf32>
    %63 = vector.broadcast %55 : vector<1x128xf32> to vector<8x128xf32>
    %64 = arith.addf %62, %63 : vector<8x128xf32>
    %cst_54 = arith.constant 0.000000e+00 : f32
    %65 = vector.broadcast %cst_54 : f32 to vector<8x128xf32>
    %66 = arith.maximumf %64, %65 : vector<8x128xf32>
    %cst_55 = arith.constant dense<0.000000e+00> : vector<8x128xf32>
    %67 = tpu.matmul %66, %49, %cst_55 {dimension_numbers = #tpu.dot_dimension_numbers<[1], [0], [0], [1], [0, 0, 1, 1], [], []>} : vector<8x128xf32>, vector<128x128xf32>, vector<8x128xf32> -> vector<8x128xf32>
    %68 = vector.broadcast %57 : vector<1x128xf32> to vector<8x128xf32>
    %69 = arith.addf %67, %68 : vector<8x128xf32>
    %cst_56 = arith.constant 0.000000e+00 : f32
    %70 = vector.broadcast %cst_56 : f32 to vector<8x128xf32>
    %71 = arith.maximumf %69, %70 : vector<8x128xf32>
    %cst_57 = arith.constant dense<0.000000e+00> : vector<8x128xf32>
    %72 = tpu.matmul %71, %51, %cst_57 {dimension_numbers = #tpu.dot_dimension_numbers<[1], [0], [0], [1], [0, 0, 1, 1], [], []>} : vector<8x128xf32>, vector<128x128xf32>, vector<8x128xf32> -> vector<8x128xf32>
    %73 = vector.broadcast %59 : vector<1x128xf32> to vector<8x128xf32>
    %74 = arith.addf %72, %73 : vector<8x128xf32>
    %cst_58 = arith.constant 0.000000e+00 : f32
    %75 = vector.broadcast %cst_58 : f32 to vector<8x128xf32>
    %76 = arith.maximumf %74, %75 : vector<8x128xf32>
    %cst_59 = arith.constant dense<0.000000e+00> : vector<8x128xf32>
    %77 = tpu.matmul %76, %53, %cst_59 {dimension_numbers = #tpu.dot_dimension_numbers<[1], [0], [0], [1], [0, 0, 1, 1], [], []>} : vector<8x128xf32>, vector<128x128xf32>, vector<8x128xf32> -> vector<8x128xf32>
    %78 = vector.broadcast %61 : vector<1x128xf32> to vector<8x128xf32>
    %79 = arith.addf %77, %78 : vector<8x128xf32>
    %80 = vector.extract_strided_slice %79 {offsets = [0, 0], sizes = [8, 1], strides = [1, 1]} : vector<8x128xf32> to vector<8x1xf32>
    %cst_60 = arith.constant dense<0.000000e+00> : vector<8xf32>
    %81 = vector.multi_reduction <add>, %79, %cst_60 [1] : vector<8x128xf32> to vector<8xf32>
    %82 = vector.shape_cast %81 : vector<8xf32> to vector<8x1xf32>
    %83 = arith.subf %82, %80 : vector<8x1xf32>
    %cst_61 = arith.constant 1.250000e-01 : f32
    %84 = vector.broadcast %cst_61 : f32 to vector<8x1xf32>
    %85 = arith.mulf %83, %84 : vector<8x1xf32>
    %86 = arith.subf %80, %85 : vector<8x1xf32>
    %87 = vector.broadcast %86 : vector<8x1xf32> to vector<8x128xf32>
    %88 = arith.addf %79, %87 : vector<8x128xf32>
    %c0_62 = arith.constant 0 : index
    %c128 = arith.constant 128 : index
    %89 = vector.load %arg3[%c0_62, %c128] : memref<8x256xf32, #tpu.memory_space<vmem>>, vector<8x128xf32>
    tpu.vector_store %arg3[%c0_62, %c128], %88 {strides = array<i32>} : memref<8x256xf32, #tpu.memory_space<vmem>>, vector<8x128xf32>,
    return
  }
  func.func @transform_0(%arg0: i32) -> (i32, i32) {
    %c0_i32 = arith.constant 0 : i32
    %c0_i32_0 = arith.constant 0 : i32
    %c0_i32_1 = arith.constant 0 : i32
    return %c0_i32, %c0_i32_0 : i32, i32
  }
  func.func @transform_1(%arg0: i32) -> (i32, i32, i32) {
    %c0_i32 = arith.constant 0 : i32
    %c0_i32_0 = arith.constant 0 : i32
    %c0_i32_1 = arith.constant 0 : i32
    %c0_i32_2 = arith.constant 0 : i32
    return %c0_i32, %c0_i32_0, %c0_i32_1 : i32, i32, i32
  }
  func.func @transform_2(%arg0: i32) -> (i32, i32) {
    %c0_i32 = arith.constant 0 : i32
    %c0_i32_0 = arith.constant 0 : i32
    %c0_i32_1 = arith.constant 0 : i32
    return %c0_i32, %c0_i32_0 : i32, i32
  }
}

</mosaic_0001>

<llo_original>
// kernel: tpu_custom_call.1
$region0: #{tpu_custom_call.1}
  #allocation0 [shape = 'u32[]', space=smem, size = 0x4, offset = 0x4, fixed_abs, tag = 'smem constant byte address 0x4 - core index']
  #allocation1 [shape = 'u32[144,128]{1,0:T(1,128)}', space=vmem, size = 0x12000, scoped, tag = 'internal scratch']
  %s0 = inlined_call_operand.hbm [shape: f32[8,32], index: 0, kind: input, shape index: {}]
  %s1 = inlined_call_operand.hbm [shape: f32[2,408,128], index: 1, kind: input, shape index: {}]
  %s2 = inlined_call_operand.hbm [shape: f32[8,256], index: 2, kind: output, shape index: {}]
  %s3 = sld [smem:[#allocation0]]
  $region26: #{tpu_custom_call.1} parent=0
    _
  %s5 = ssub.s32 1, %s3
  %s6 = scalar_select 0, %s5, %s3
  $region1: #{tpu_custom_call.1} parent=0
    #allocation2 [shape = 'u8[4096]{0}', space=vmem, size = 0x1000, scoped, tag = 'input window, operand 0, single buffered']
    #allocation3 [shape = 's32[1]{0}', space=sflag, size = 0x4, scoped, tag = 'scoped memory for tpu_custom_call.1']
    #allocation4 [shape = 's32[1]{0}', space=sflag, size = 0x4, scoped, tag = 'scoped memory for tpu_custom_call.1']
    #allocation5 [shape = 'u8[417792]{0}', space=vmem, size = 0x66000, scoped, tag = 'input window, operand 1, single buffered']
    #allocation6 [shape = 's32[1]{0}', space=sflag, size = 0x4, scoped, tag = 'scoped memory for tpu_custom_call.1']
    #allocation7 [shape = 'u8[8192]{0}', space=vmem, size = 0x2000, scoped, tag = 'output window, operand 0, single buffered']
    %7 = vsyncpa [#allocation3], 0
    %8 = vsyncpa [#allocation6], 0
    %9 = vsyncpa [#allocation4], 0
    // Predicated region
    $region2: #{tpu_custom_call.1} parent=1 // pred_check
      _
    $region3: #{tpu_custom_call.1} parent=1 // pred_check_branch
      %11 = sbr.rel (0) target = $region5
    $region4: #{tpu_custom_call.1} parent=1 // pred_region
      %s13 = ssub.s32 128, 128
      %14 = vsyncadd [#allocation3], %s13
      %s16 = sshll.u32 [#allocation2], 4
      %s17 = int_to_ptr.vmem [resolvable:$true] %s16
      %19 = dma.hbm_to_vmem [thread:$0]  %s0, 128, %s17, [#allocation3]
    $region5: #{tpu_custom_call.1} parent=1 // pred_fallthru
      _
    // Predicated region
    $region6: #{tpu_custom_call.1} parent=1 // pred_check
      _
    $region7: #{tpu_custom_call.1} parent=1 // pred_check_branch
      %21 = sbr.rel (0) target = $region9
    $region8: #{tpu_custom_call.1} parent=1 // pred_region
      %s23 = ssub.s32 13056, 13056
      %24 = vsyncadd [#allocation6], %s23
      %s25 = sshll.u32 [#allocation5], 4
      %s26 = int_to_ptr.vmem [resolvable:$true] %s25
      %31 = dma.hbm_to_vmem [thread:$0]  %s1, 13056, %s26, [#allocation6], 128, 128, 8
    $region9: #{tpu_custom_call.1} parent=1 // pred_fallthru
      _
    // Predicated region
    $region10: #{tpu_custom_call.1} parent=1 // pred_check
      _
    $region11: #{tpu_custom_call.1} parent=1 // pred_check_branch
      %33 = sbr.rel (0) target = $region13
    $region12: #{tpu_custom_call.1} parent=1 // pred_region
      %34 = dma.done [#allocation3], 128
    $region13: #{tpu_custom_call.1} parent=1 // pred_fallthru
      _
    // Predicated region
    $region14: #{tpu_custom_call.1} parent=1 // pred_check
      _
    $region15: #{tpu_custom_call.1} parent=1 // pred_check_branch
      %36 = sbr.rel (0) target = $region17
    $region16: #{tpu_custom_call.1} parent=1 // pred_region
      %37 = dma.done [#allocation6], 13056
    $region17: #{tpu_custom_call.1} parent=1 // pred_fallthru
      _
    %v38 = vld [vmem:[#allocation2] sm:$0xff]
    %v39 = vld [vmem:[#allocation5] sm:$0xff]
    %v40 = vld [vmem:[#allocation5 + $0x8] sm:$0xff]
    %v41 = vld [vmem:[#allocation5 + $0x10] sm:$0xff]
    %v42 = vld [vmem:[#allocation5 + $0x18] sm:$0xff]
    %v43 = vld [vmem:[#allocation5 + $0x20] sm:$0xff]
    %v44 = vld [vmem:[#allocation5 + $0x28] sm:$0xff]
    %v45 = vld [vmem:[#allocation5 + $0x30] sm:$0xff]
    %v46 = vld [vmem:[#allocation5 + $0x38] sm:$0xff]
    %v47 = vld [vmem:[#allocation5 + $0x40] sm:$0xff]
    %v48 = vld [vmem:[#allocation5 + $0x48] sm:$0xff]
    %v49 = vld [vmem:[#allocation5 + $0x50] sm:$0xff]
    %v50 = vld [vmem:[#allocation5 + $0x58] sm:$0xff]
    %v51 = vld [vmem:[#allocation5 + $0x60] sm:$0xff]
    %v52 = vld [vmem:[#allocation5 + $0x68] sm:$0xff]
    %v53 = vld [vmem:[#allocation5 + $0x70] sm:$0xff]
    %v54 = vld [vmem:[#allocation5 + $0x78] sm:$0xff]
    %v55 = vld [vmem:[#allocation5 + $0x80] sm:$0xff]
    %v56 = vld [vmem:[#allocation5 + $0x88] sm:$0xff]
    %v57 = vld [vmem:[#allocation5 + $0x90] sm:$0xff]
    %v58 = vld [vmem:[#allocation5 + $0x98] sm:$0xff]
    %v59 = vld [vmem:[#allocation5 + $0xa0] sm:$0xff]
    %v60 = vld [vmem:[#allocation5 + $0xa8] sm:$0xff]
    %v61 = vld [vmem:[#allocation5 + $0xb0] sm:$0xff]
    %v62 = vld [vmem:[#allocation5 + $0xb8] sm:$0xff]
    %v63 = vld [vmem:[#allocation5 + $0xc0] sm:$0xff]
    %v64 = vld [vmem:[#allocation5 + $0xc8] sm:$0xff]
    %v65 = vld [vmem:[#allocation5 + $0xd0] sm:$0xff]
    %v66 = vld [vmem:[#allocation5 + $0xd8] sm:$0xff]
    %v67 = vld [vmem:[#allocation5 + $0xe0] sm:$0xff]
    %v68 = vld [vmem:[#allocation5 + $0xe8] sm:$0xff]
    %v69 = vld [vmem:[#allocation5 + $0xf0] sm:$0xff]
    %v70 = vld [vmem:[#allocation5 + $0xf8] sm:$0xff]
    %v71 = vld [vmem:[#allocation5 + $0x100] sm:$0xff]
    %v72 = vld [vmem:[#allocation5 + $0x108] sm:$0xff]
    %v73 = vld [vmem:[#allocation5 + $0x110] sm:$0xff]
    %v74 = vld [vmem:[#allocation5 + $0x118] sm:$0xff]
    %v75 = vld [vmem:[#allocation5 + $0x120] sm:$0xff]
    %v76 = vld [vmem:[#allocation5 + $0x128] sm:$0xff]
    %v77 = vld [vmem:[#allocation5 + $0x130] sm:$0xff]
    %v78 = vld [vmem:[#allocation5 + $0x138] sm:$0xff]
    %v79 = vld [vmem:[#allocation5 + $0x140] sm:$0xff]
    %v80 = vld [vmem:[#allocation5 + $0x148] sm:$0xff]
    %v81 = vld [vmem:[#allocation5 + $0x150] sm:$0xff]
    %v82 = vld [vmem:[#allocation5 + $0x158] sm:$0xff]
    %v83 = vld [vmem:[#allocation5 + $0x160] sm:$0xff]
    %v84 = vld [vmem:[#allocation5 + $0x168] sm:$0xff]
    %v85 = vld [vmem:[#allocation5 + $0x170] sm:$0xff]
    %v86 = vld [vmem:[#allocation5 + $0x178] sm:$0xff]
    %v87 = vld [vmem:[#allocation5 + $0x180] sm:$0xff]
    %v88 = vld [vmem:[#allocation5 + $0x188] sm:$0xff]
    %v89 = vld [vmem:[#allocation5 + $0x190] sm:$0x1]
    %v90 = vld [vmem:[#allocation5 + $0x191] sm:$0x1]
    %v91 = vld [vmem:[#allocation5 + $0x192] sm:$0x1]
    %v92 = vld [vmem:[#allocation5 + $0x193] sm:$0x1]
    %v93 = vlaneseq
    %v94 = vshrl.u32 %v93, 7
    %v95 = vsub.s32 0, %v94
    %v96 = vrot.slane %v89, %v95
    %vm97 = vcmask 130048
    %v99 = vsel %vm97, %v38, 0
    %101 = vmatprep.subr.mxu0 0.0
    %102 = vmatpush1.msra.mxu0 %v39
    %103 = vmatprep.subr.mxu0 0.0
    %104 = vmatpush1.msra.mxu0 %v40
    %105 = vmatprep.subr.mxu0 0.0
    %106 = vmatpush1.msra.mxu0 0.0
    %107 = vmatprep.subr.mxu0 0.0
    %108 = vmatpush1.msra.mxu0 0.0
    %109 = vmatprep.subr.mxu0 0.0
    %110 = vmatpush1.msra.mxu0 0.0
    %111 = vmatprep.subr.mxu0 0.0
    %112 = vmatpush1.msra.mxu0 0.0
    %113 = vmatprep.subr.mxu0 0.0
    %114 = vmatpush1.msra.mxu0 0.0
    %115 = vmatprep.subr.mxu0 0.0
    %116 = vmatpush1.msra.mxu0 0.0
    %117 = vmatprep.subr.mxu0 0.0
    %118 = vmatpush1.msra.mxu0 0.0
    %119 = vmatprep.subr.mxu0 0.0
    %120 = vmatpush1.msra.mxu0 0.0
    %121 = vmatprep.subr.mxu0 0.0
    %122 = vmatpush1.msra.mxu0 0.0
    %123 = vmatprep.subr.mxu0 0.0
    %124 = vmatpush1.msra.mxu0 0.0
    %125 = vmatprep.subr.mxu0 0.0
    %126 = vmatpush1.msra.mxu0 0.0
    %127 = vmatprep.subr.mxu0 0.0
    %128 = vmatpush1.msra.mxu0 0.0
    %129 = vmatprep.subr.mxu0 0.0
    %130 = vmatpush1.msra.mxu0 0.0
    %131 = vmatprep.subr.mxu0 0.0
    %132 = vmatpush1.msra.mxu0 0.0
    %133 = vmatprep.subr.mxu0 0.0
    %134 = vmatpush1.msra.mxu0 0.0
    %135 = vmatprep.subr.mxu0 0.0
    %136 = vmatpush1.msra.mxu0 0.0
    %137 = vmatprep.subr.mxu0 0.0
    %138 = vmatpush1.msra.mxu0 0.0
    %139 = vmatprep.subr.mxu0 0.0
    %140 = vmatpush1.msra.mxu0 0.0
    %141 = vmatprep.subr.mxu0 0.0
    %142 = vmatpush1.msra.mxu0 0.0
    %143 = vmatprep.subr.mxu0 0.0
    %144 = vmatpush1.msra.mxu0 0.0
    %145 = vmatprep.subr.mxu0 0.0
    %146 = vmatpush1.msra.mxu0 0.0
    %147 = vmatprep.subr.mxu0 0.0
    %148 = vmatpush1.msra.mxu0 0.0
    %149 = vmatprep.subr.mxu0 0.0
    %150 = vmatpush1.msra.mxu0 0.0
    %151 = vmatprep.subr.mxu0 0.0
    %152 = vmatpush1.msra.mxu0 0.0
    %153 = vmatprep.subr.mxu0 0.0
    %154 = vmatpush1.msra.mxu0 0.0
    %155 = vmatprep.subr.mxu0 0.0
    %156 = vmatpush1.msra.mxu0 0.0
    %157 = vmatprep.subr.mxu0 0.0
    %158 = vmatpush1.msra.mxu0 0.0
    %159 = vmatprep.subr.mxu0 0.0
    %160 = vmatpush1.msra.mxu0 0.0
    %161 = vmatprep.subr.mxu0 0.0
    %162 = vmatpush1.msra.mxu0 0.0
    %163 = vmatprep.subr.mxu0 0.0
    %164 = vmatpush1.msra.mxu0 0.0
    %165 = vmatprep.mubr.f32.mxu0 0.0
    %166 = vmatmul.mubr.f32.gmra.mrb[0].mxu0 %v99
    %v167 = vpop.f32.mrb[0].mxu0
    %v168 = vadd.f32 %v96, %v167
    %v169 = vpop.f32.mrb[0].mxu0
    %170 = vdwg.mxu0
    %v171 = vmax.f32 %v168, 0.0
    %v172 = vlaneseq
    %v173 = vshrl.u32 %v172, 7
    %v174 = vsub.s32 0, %v173
    %v175 = vrot.slane %v90, %v174
    %176 = vmatprep.subr.mxu0 0.0
    %177 = vmatpush1.msra.mxu0 %v41
    %178 = vmatprep.subr.mxu0 0.0
    %179 = vmatpush1.msra.mxu0 %v42
    %180 = vmatprep.subr.mxu0 0.0
    %181 = vmatpush1.msra.mxu0 %v43
    %182 = vmatprep.subr.mxu0 0.0
    %183 = vmatpush1.msra.mxu0 %v44
    %184 = vmatprep.subr.mxu0 0.0
    %185 = vmatpush1.msra.mxu0 %v45
    %186 = vmatprep.subr.mxu0 0.0
    %187 = vmatpush1.msra.mxu0 %v46
    %188 = vmatprep.subr.mxu0 0.0
    %189 = vmatpush1.msra.mxu0 %v47
    %190 = vmatprep.subr.mxu0 0.0
    %191 = vmatpush1.msra.mxu0 %v48
    %192 = vmatprep.subr.mxu0 0.0
    %193 = vmatpush1.msra.mxu0 %v49
    %194 = vmatprep.subr.mxu0 0.0
    %195 = vmatpush1.msra.mxu0 %v50
    %196 = vmatprep.subr.mxu0 0.0
    %197 = vmatpush1.msra.mxu0 %v51
    %198 = vmatprep.subr.mxu0 0.0
    %199 = vmatpush1.msra.mxu0 %v52
    %200 = vmatprep.subr.mxu0 0.0
    %201 = vmatpush1.msra.mxu0 %v53
    %202 = vmatprep.subr.mxu0 0.0
    %203 = vmatpush1.msra.mxu0 %v54
    %204 = vmatprep.subr.mxu0 0.0
    %205 = vmatpush1.msra.mxu0 %v55
    %206 = vmatprep.subr.mxu0 0.0
    %207 = vmatpush1.msra.mxu0 %v56
    %208 = vmatprep.subr.mxu0 0.0
    %209 = vmatpush1.msra.mxu0 0.0
    %210 = vmatprep.subr.mxu0 0.0
    %211 = vmatpush1.msra.mxu0 0.0
    %212 = vmatprep.subr.mxu0 0.0
    %213 = vmatpush1.msra.mxu0 0.0
    %214 = vmatprep.subr.mxu0 0.0
    %215 = vmatpush1.msra.mxu0 0.0
    %216 = vmatprep.subr.mxu0 0.0
    %217 = vmatpush1.msra.mxu0 0.0
    %218 = vmatprep.subr.mxu0 0.0
    %219 = vmatpush1.msra.mxu0 0.0
    %220 = vmatprep.subr.mxu0 0.0
    %221 = vmatpush1.msra.mxu0 0.0
    %222 = vmatprep.subr.mxu0 0.0
    %223 = vmatpush1.msra.mxu0 0.0
    %224 = vmatprep.subr.mxu0 0.0
    %225 = vmatpush1.msra.mxu0 0.0
    %226 = vmatprep.subr.mxu0 0.0
    %227 = vmatpush1.msra.mxu0 0.0
    %228 = vmatprep.subr.mxu0 0.0
    %229 = vmatpush1.msra.mxu0 0.0
    %230 = vmatprep.subr.mxu0 0.0
    %231 = vmatpush1.msra.mxu0 0.0
    %232 = vmatprep.subr.mxu0 0.0
    %233 = vmatpush1.msra.mxu0 0.0
    %234 = vmatprep.subr.mxu0 0.0
    %235 = vmatpush1.msra.mxu0 0.0
    %236 = vmatprep.subr.mxu0 0.0
    %237 = vmatpush1.msra.mxu0 0.0
    %238 = vmatprep.subr.mxu0 0.0
    %239 = vmatpush1.msra.mxu0 0.0
    %240 = vmatprep.mubr.f32.mxu0 0.0
    %241 = vmatmul.mubr.f32.gmra.mrb[0].mxu0 %v171
    %v242 = vpop.f32.mrb[0].mxu0
    %v243 = vadd.f32 %v175, %v242
    %v244 = vpop.f32.mrb[0].mxu0
    %245 = vdwg.mxu0
    %v246 = vmax.f32 %v243, 0.0
    %v247 = vlaneseq
    %v248 = vshrl.u32 %v247, 7
    %v249 = vsub.s32 0, %v248
    %v250 = vrot.slane %v91, %v249
    %251 = vmatprep.subr.mxu0 0.0
    %252 = vmatpush1.msra.mxu0 %v57
    %253 = vmatprep.subr.mxu0 0.0
    %254 = vmatpush1.msra.mxu0 %v58
    %255 = vmatprep.subr.mxu0 0.0
    %256 = vmatpush1.msra.mxu0 %v59
    %257 = vmatprep.subr.mxu0 0.0
    %258 = vmatpush1.msra.mxu0 %v60
    %259 = vmatprep.subr.mxu0 0.0
    %260 = vmatpush1.msra.mxu0 %v61
    %261 = vmatprep.subr.mxu0 0.0
    %262 = vmatpush1.msra.mxu0 %v62
    %263 = vmatprep.subr.mxu0 0.0
    %264 = vmatpush1.msra.mxu0 %v63
    %265 = vmatprep.subr.mxu0 0.0
    %266 = vmatpush1.msra.mxu0 %v64
    %267 = vmatprep.subr.mxu0 0.0
    %268 = vmatpush1.msra.mxu0 %v65
    %269 = vmatprep.subr.mxu0 0.0
    %270 = vmatpush1.msra.mxu0 %v66
    %271 = vmatprep.subr.mxu0 0.0
    %272 = vmatpush1.msra.mxu0 %v67
    %273 = vmatprep.subr.mxu0 0.0
    %274 = vmatpush1.msra.mxu0 %v68
    %275 = vmatprep.subr.mxu0 0.0
    %276 = vmatpush1.msra.mxu0 %v69
    %277 = vmatprep.subr.mxu0 0.0
    %278 = vmatpush1.msra.mxu0 %v70
    %279 = vmatprep.subr.mxu0 0.0
    %280 = vmatpush1.msra.mxu0 %v71
    %281 = vmatprep.subr.mxu0 0.0
    %282 = vmatpush1.msra.mxu0 %v72
    %283 = vmatprep.subr.mxu0 0.0
    %284 = vmatpush1.msra.mxu0 0.0
    %285 = vmatprep.subr.mxu0 0.0
    %286 = vmatpush1.msra.mxu0 0.0
    %287 = vmatprep.subr.mxu0 0.0
    %288 = vmatpush1.msra.mxu0 0.0
    %289 = vmatprep.subr.mxu0 0.0
    %290 = vmatpush1.msra.mxu0 0.0
    %291 = vmatprep.subr.mxu0 0.0
    %292 = vmatpush1.msra.mxu0 0.0
    %293 = vmatprep.subr.mxu0 0.0
    %294 = vmatpush1.msra.mxu0 0.0
    %295 = vmatprep.subr.mxu0 0.0
    %296 = vmatpush1.msra.mxu0 0.0
    %297 = vmatprep.subr.mxu0 0.0
    %298 = vmatpush1.msra.mxu0 0.0
    %299 = vmatprep.subr.mxu0 0.0
    %300 = vmatpush1.msra.mxu0 0.0
    %301 = vmatprep.subr.mxu0 0.0
    %302 = vmatpush1.msra.mxu0 0.0
    %303 = vmatprep.subr.mxu0 0.0
    %304 = vmatpush1.msra.mxu0 0.0
    %305 = vmatprep.subr.mxu0 0.0
    %306 = vmatpush1.msra.mxu0 0.0
    %307 = vmatprep.subr.mxu0 0.0
    %308 = vmatpush1.msra.mxu0 0.0
    %309 = vmatprep.subr.mxu0 0.0
    %310 = vmatpush1.msra.mxu0 0.0
    %311 = vmatprep.subr.mxu0 0.0
    %312 = vmatpush1.msra.mxu0 0.0
    %313 = vmatprep.subr.mxu0 0.0
    %314 = vmatpush1.msra.mxu0 0.0
    %315 = vmatprep.mubr.f32.mxu0 0.0
    %316 = vmatmul.mubr.f32.gmra.mrb[0].mxu0 %v246
    %v317 = vpop.f32.mrb[0].mxu0
    %v318 = vadd.f32 %v250, %v317
    %v319 = vpop.f32.mrb[0].mxu0
    %320 = vdwg.mxu0
    %v321 = vmax.f32 %v318, 0.0
    %v322 = vlaneseq
    %v323 = vshrl.u32 %v322, 7
    %v324 = vsub.s32 0, %v323
    %v325 = vrot.slane %v92, %v324
    %326 = vmatprep.subr.mxu0 0.0
    %327 = vmatpush1.msra.mxu0 %v73
    %328 = vmatprep.subr.mxu0 0.0
    %329 = vmatpush1.msra.mxu0 %v74
    %330 = vmatprep.subr.mxu0 0.0
    %331 = vmatpush1.msra.mxu0 %v75
    %332 = vmatprep.subr.mxu0 0.0
    %333 = vmatpush1.msra.mxu0 %v76
    %334 = vmatprep.subr.mxu0 0.0
    %335 = vmatpush1.msra.mxu0 %v77
    %336 = vmatprep.subr.mxu0 0.0
    %337 = vmatpush1.msra.mxu0 %v78
    %338 = vmatprep.subr.mxu0 0.0
    %339 = vmatpush1.msra.mxu0 %v79
    %340 = vmatprep.subr.mxu0 0.0
    %341 = vmatpush1.msra.mxu0 %v80
    %342 = vmatprep.subr.mxu0 0.0
    %343 = vmatpush1.msra.mxu0 %v81
    %344 = vmatprep.subr.mxu0 0.0
    %345 = vmatpush1.msra.mxu0 %v82
    %346 = vmatprep.subr.mxu0 0.0
    %347 = vmatpush1.msra.mxu0 %v83
    %348 = vmatprep.subr.mxu0 0.0
    %349 = vmatpush1.msra.mxu0 %v84
    %350 = vmatprep.subr.mxu0 0.0
    %351 = vmatpush1.msra.mxu0 %v85
    %352 = vmatprep.subr.mxu0 0.0
    %353 = vmatpush1.msra.mxu0 %v86
    %354 = vmatprep.subr.mxu0 0.0
    %355 = vmatpush1.msra.mxu0 %v87
    %356 = vmatprep.subr.mxu0 0.0
    %357 = vmatpush1.msra.mxu0 %v88
    %358 = vmatprep.subr.mxu0 0.0
    %359 = vmatpush1.msra.mxu0 0.0
    %360 = vmatprep.subr.mxu0 0.0
    %361 = vmatpush1.msra.mxu0 0.0
    %362 = vmatprep.subr.mxu0 0.0
    %363 = vmatpush1.msra.mxu0 0.0
    %364 = vmatprep.subr.mxu0 0.0
    %365 = vmatpush1.msra.mxu0 0.0
    %366 = vmatprep.subr.mxu0 0.0
    %367 = vmatpush1.msra.mxu0 0.0
    %368 = vmatprep.subr.mxu0 0.0
    %369 = vmatpush1.msra.mxu0 0.0
    %370 = vmatprep.subr.mxu0 0.0
    %371 = vmatpush1.msra.mxu0 0.0
    %372 = vmatprep.subr.mxu0 0.0
    %373 = vmatpush1.msra.mxu0 0.0
    %374 = vmatprep.subr.mxu0 0.0
    %375 = vmatpush1.msra.mxu0 0.0
    %376 = vmatprep.subr.mxu0 0.0
    %377 = vmatpush1.msra.mxu0 0.0
    %378 = vmatprep.subr.mxu0 0.0
    %379 = vmatpush1.msra.mxu0 0.0
    %380 = vmatprep.subr.mxu0 0.0
    %381 = vmatpush1.msra.mxu0 0.0
    %382 = vmatprep.subr.mxu0 0.0
    %383 = vmatpush1.msra.mxu0 0.0
    %384 = vmatprep.subr.mxu0 0.0
    %385 = vmatpush1.msra.mxu0 0.0
    %386 = vmatprep.subr.mxu0 0.0
    %387 = vmatpush1.msra.mxu0 0.0
    %388 = vmatprep.subr.mxu0 0.0
    %389 = vmatpush1.msra.mxu0 0.0
    %390 = vmatprep.mubr.f32.mxu0 0.0
    %391 = vmatmul.mubr.f32.gmra.mrb[0].mxu0 %v321
    %v392 = vpop.f32.mrb[0].mxu0
    %v393 = vadd.f32 %v325, %v392
    %v394 = vpop.f32.mrb[0].mxu0
    %395 = vdwg.mxu0
    %396 = vadd.xlane.f32.xlu0 %v393
    %v397 = vpop.xlane.xlu0 %396
    %v398 = vsub.f32 %v397, %v393
    %v399 = vmul.f32 %v398, 0.125
    %v400 = vsub.f32 %v393, %v399
    %402 = vset.pattern.permute.xlu0 0
    %403 = vperm.xlu0 %402, %v400
    %v404 = vpop.permute.xlu0 %403
    %v406 = vadd.f32 %v393, %v404
    %407 = vst [vmem:[#allocation7] sm:$0xff] %v406
    %v408 = vld [vmem:[#allocation2] sm:$0xff]
    %s409 = scalar_lea.vmem [#allocation5], 408
    %v410 = vld [vmem:[%s409] sm:$0xff]
    %v411 = vld [vmem:[%s409 + $0x8] sm:$0xff]
    %v412 = vld [vmem:[%s409 + $0x10] sm:$0xff]
    %v413 = vld [vmem:[%s409 + $0x18] sm:$0xff]
    %v414 = vld [vmem:[%s409 + $0x20] sm:$0xff]
    %v415 = vld [vmem:[%s409 + $0x28] sm:$0xff]
    %v416 = vld [vmem:[%s409 + $0x30] sm:$0xff]
    %v417 = vld [vmem:[%s409 + $0x38] sm:$0xff]
    %v418 = vld [vmem:[%s409 + $0x40] sm:$0xff]
    %v419 = vld [vmem:[%s409 + $0x48] sm:$0xff]
    %v420 = vld [vmem:[%s409 + $0x50] sm:$0xff]
    %v421 = vld [vmem:[%s409 + $0x58] sm:$0xff]
    %v422 = vld [vmem:[%s409 + $0x60] sm:$0xff]
    %v423 = vld [vmem:[%s409 + $0x68] sm:$0xff]
    %v424 = vld [vmem:[%s409 + $0x70] sm:$0xff]
    %v425 = vld [vmem:[%s409 + $0x78] sm:$0xff]
    %v426 = vld [vmem:[%s409 + $0x80] sm:$0xff]
    %v427 = vld [vmem:[%s409 + $0x88] sm:$0xff]
    %v428 = vld [vmem:[%s409 + $0x90] sm:$0xff]
    %v429 = vld [vmem:[%s409 + $0x98] sm:$0xff]
    %v430 = vld [vmem:[%s409 + $0xa0] sm:$0xff]
    %v431 = vld [vmem:[%s409 + $0xa8] sm:$0xff]
    %v432 = vld [vmem:[%s409 + $0xb0] sm:$0xff]
    %v433 = vld [vmem:[%s409 + $0xb8] sm:$0xff]
    %v434 = vld [vmem:[%s409 + $0xc0] sm:$0xff]
    %v435 = vld [vmem:[%s409 + $0xc8] sm:$0xff]
    %v436 = vld [vmem:[%s409 + $0xd0] sm:$0xff]
    %v437 = vld [vmem:[%s409 + $0xd8] sm:$0xff]
    %v438 = vld [vmem:[%s409 + $0xe0] sm:$0xff]
    %v439 = vld [vmem:[%s409 + $0xe8] sm:$0xff]
    %v440 = vld [vmem:[%s409 + $0xf0] sm:$0xff]
    %v441 = vld [vmem:[%s409 + $0xf8] sm:$0xff]
    %v442 = vld [vmem:[%s409 + $0x100] sm:$0xff]
    %v443 = vld [vmem:[%s409 + $0x108] sm:$0xff]
    %v444 = vld [vmem:[%s409 + $0x110] sm:$0xff]
    %v445 = vld [vmem:[%s409 + $0x118] sm:$0xff]
    %v446 = vld [vmem:[%s409 + $0x120] sm:$0xff]
    %v447 = vld [vmem:[%s409 + $0x128] sm:$0xff]
    %v448 = vld [vmem:[%s409 + $0x130] sm:$0xff]
    %v449 = vld [vmem:[%s409 + $0x138] sm:$0xff]
    %v450 = vld [vmem:[%s409 + $0x140] sm:$0xff]
    %v451 = vld [vmem:[%s409 + $0x148] sm:$0xff]
    %v452 = vld [vmem:[%s409 + $0x150] sm:$0xff]
    %v453 = vld [vmem:[%s409 + $0x158] sm:$0xff]
    %v454 = vld [vmem:[%s409 + $0x160] sm:$0xff]
    %v455 = vld [vmem:[%s409 + $0x168] sm:$0xff]
    %v456 = vld [vmem:[%s409 + $0x170] sm:$0xff]
    %v457 = vld [vmem:[%s409 + $0x178] sm:$0xff]
    %v458 = vld [vmem:[%s409 + $0x180] sm:$0xff]
    %v459 = vld [vmem:[%s409 + $0x188] sm:$0xff]
    %v460 = vld [vmem:[%s409 + $0x190] sm:$0x1]
    %v461 = vld [vmem:[%s409 + $0x191] sm:$0x1]
    %v462 = vld [vmem:[%s409 + $0x192] sm:$0x1]
    %v463 = vld [vmem:[%s409 + $0x193] sm:$0x1]
    %v464 = vlaneseq
    %v465 = vshrl.u32 %v464, 7
    %v466 = vsub.s32 0, %v465
    %v467 = vrot.slane %v460, %v466
    %469 = vrot.lane.b32.xlu0 %v408, 112
    %v470 = vpop.permute.xlu0 %469
    %v471 = vsel %vm97, %v470, 0
    %473 = vmatprep.subr.mxu0 0.0
    %474 = vmatpush1.msra.mxu0 %v410
    %475 = vmatprep.subr.mxu0 0.0
    %476 = vmatpush1.msra.mxu0 %v411
    %477 = vmatprep.subr.mxu0 0.0
    %478 = vmatpush1.msra.mxu0 0.0
    %479 = vmatprep.subr.mxu0 0.0
    %480 = vmatpush1.msra.mxu0 0.0
    %481 = vmatprep.subr.mxu0 0.0
    %482 = vmatpush1.msra.mxu0 0.0
    %483 = vmatprep.subr.mxu0 0.0
    %484 = vmatpush1.msra.mxu0 0.0
    %485 = vmatprep.subr.mxu0 0.0
    %486 = vmatpush1.msra.mxu0 0.0
    %487 = vmatprep.subr.mxu0 0.0
    %488 = vmatpush1.msra.mxu0 0.0
    %489 = vmatprep.subr.mxu0 0.0
    %490 = vmatpush1.msra.mxu0 0.0
    %491 = vmatprep.subr.mxu0 0.0
    %492 = vmatpush1.msra.mxu0 0.0
    %493 = vmatprep.subr.mxu0 0.0
    %494 = vmatpush1.msra.mxu0 0.0
    %495 = vmatprep.subr.mxu0 0.0
    %496 = vmatpush1.msra.mxu0 0.0
    %497 = vmatprep.subr.mxu0 0.0
    %498 = vmatpush1.msra.mxu0 0.0
    %499 = vmatprep.subr.mxu0 0.0
    %500 = vmatpush1.msra.mxu0 0.0
    %501 = vmatprep.subr.mxu0 0.0
    %502 = vmatpush1.msra.mxu0 0.0
    %503 = vmatprep.subr.mxu0 0.0
    %504 = vmatpush1.msra.mxu0 0.0
    %505 = vmatprep.subr.mxu0 0.0
    %506 = vmatpush1.msra.mxu0 0.0
    %507 = vmatprep.subr.mxu0 0.0
    %508 = vmatpush1.msra.mxu0 0.0
    %509 = vmatprep.subr.mxu0 0.0
    %510 = vmatpush1.msra.mxu0 0.0
    %511 = vmatprep.subr.mxu0 0.0
    %512 = vmatpush1.msra.mxu0 0.0
    %513 = vmatprep.subr.mxu0 0.0
    %514 = vmatpush1.msra.mxu0 0.0
    %515 = vmatprep.subr.mxu0 0.0
    %516 = vmatpush1.msra.mxu0 0.0
    %517 = vmatprep.subr.mxu0 0.0
    %518 = vmatpush1.msra.mxu0 0.0
    %519 = vmatprep.subr.mxu0 0.0
    %520 = vmatpush1.msra.mxu0 0.0
    %521 = vmatprep.subr.mxu0 0.0
    %522 = vmatpush1.msra.mxu0 0.0
    %523 = vmatprep.subr.mxu0 0.0
    %524 = vmatpush1.msra.mxu0 0.0
    %525 = vmatprep.subr.mxu0 0.0
    %526 = vmatpush1.msra.mxu0 0.0
    %527 = vmatprep.subr.mxu0 0.0
    %528 = vmatpush1.msra.mxu0 0.0
    %529 = vmatprep.subr.mxu0 0.0
    %530 = vmatpush1.msra.mxu0 0.0
    %531 = vmatprep.subr.mxu0 0.0
    %532 = vmatpush1.msra.mxu0 0.0
    %533 = vmatprep.subr.mxu0 0.0
    %534 = vmatpush1.msra.mxu0 0.0
    %535 = vmatprep.subr.mxu0 0.0
    %536 = vmatpush1.msra.mxu0 0.0
    %537 = vmatprep.mubr.f32.mxu0 0.0
    %538 = vmatmul.mubr.f32.gmra.mrb[0].mxu0 %v471
    %v539 = vpop.f32.mrb[0].mxu0
    %v540 = vadd.f32 %v467, %v539
    %v541 = vpop.f32.mrb[0].mxu0
    %542 = vdwg.mxu0
    %v543 = vmax.f32 %v540, 0.0
    %v544 = vlaneseq
    %v545 = vshrl.u32 %v544, 7
    %v546 = vsub.s32 0, %v545
    %v547 = vrot.slane %v461, %v546
    %548 = vmatprep.subr.mxu0 0.0
    %549 = vmatpush1.msra.mxu0 %v412
    %550 = vmatprep.subr.mxu0 0.0
    %551 = vmatpush1.msra.mxu0 %v413
    %552 = vmatprep.subr.mxu0 0.0
    %553 = vmatpush1.msra.mxu0 %v414
    %554 = vmatprep.subr.mxu0 0.0
    %555 = vmatpush1.msra.mxu0 %v415
    %556 = vmatprep.subr.mxu0 0.0
    %557 = vmatpush1.msra.mxu0 %v416
    %558 = vmatprep.subr.mxu0 0.0
    %559 = vmatpush1.msra.mxu0 %v417
    %560 = vmatprep.subr.mxu0 0.0
    %561 = vmatpush1.msra.mxu0 %v418
    %562 = vmatprep.subr.mxu0 0.0
    %563 = vmatpush1.msra.mxu0 %v419
    %564 = vmatprep.subr.mxu0 0.0
    %565 = vmatpush1.msra.mxu0 %v420
    %566 = vmatprep.subr.mxu0 0.0
    %567 = vmatpush1.msra.mxu0 %v421
    %568 = vmatprep.subr.mxu0 0.0
    %569 = vmatpush1.msra.mxu0 %v422
    %570 = vmatprep.subr.mxu0 0.0
    %571 = vmatpush1.msra.mxu0 %v423
    %572 = vmatprep.subr.mxu0 0.0
    %573 = vmatpush1.msra.mxu0 %v424
    %574 = vmatprep.subr.mxu0 0.0
    %575 = vmatpush1.msra.mxu0 %v425
    %576 = vmatprep.subr.mxu0 0.0
    %577 = vmatpush1.msra.mxu0 %v426
    %578 = vmatprep.subr.mxu0 0.0
    %579 = vmatpush1.msra.mxu0 %v427
    %580 = vmatprep.subr.mxu0 0.0
    %581 = vmatpush1.msra.mxu0 0.0
    %582 = vmatprep.subr.mxu0 0.0
    %583 = vmatpush1.msra.mxu0 0.0
    %584 = vmatprep.subr.mxu0 0.0
    %585 = vmatpush1.msra.mxu0 0.0
    %586 = vmatprep.subr.mxu0 0.0
    %587 = vmatpush1.msra.mxu0 0.0
    %588 = vmatprep.subr.mxu0 0.0
    %589 = vmatpush1.msra.mxu0 0.0
    %590 = vmatprep.subr.mxu0 0.0
    %591 = vmatpush1.msra.mxu0 0.0
    %592 = vmatprep.subr.mxu0 0.0
    %593 = vmatpush1.msra.mxu0 0.0
    %594 = vmatprep.subr.mxu0 0.0
    %595 = vmatpush1.msra.mxu0 0.0
    %596 = vmatprep.subr.mxu0 0.0
    %597 = vmatpush1.msra.mxu0 0.0
    %598 = vmatprep.subr.mxu0 0.0
    %599 = vmatpush1.msra.mxu0 0.0
    %600 = vmatprep.subr.mxu0 0.0
    %601 = vmatpush1.msra.mxu0 0.0
    %602 = vmatprep.subr.mxu0 0.0
    %603 = vmatpush1.msra.mxu0 0.0
    %604 = vmatprep.subr.mxu0 0.0
    %605 = vmatpush1.msra.mxu0 0.0
    %606 = vmatprep.subr.mxu0 0.0
    %607 = vmatpush1.msra.mxu0 0.0
    %608 = vmatprep.subr.mxu0 0.0
    %609 = vmatpush1.msra.mxu0 0.0
    %610 = vmatprep.subr.mxu0 0.0
    %611 = vmatpush1.msra.mxu0 0.0
    %612 = vmatprep.mubr.f32.mxu0 0.0
    %613 = vmatmul.mubr.f32.gmra.mrb[0].mxu0 %v543
    %v614 = vpop.f32.mrb[0].mxu0
    %v615 = vadd.f32 %v547, %v614
    %v616 = vpop.f32.mrb[0].mxu0
    %617 = vdwg.mxu0
    %v618 = vmax.f32 %v615, 0.0
    %v619 = vlaneseq
    %v620 = vshrl.u32 %v619, 7
    %v621 = vsub.s32 0, %v620
    %v622 = vrot.slane %v462, %v621
    %623 = vmatprep.subr.mxu0 0.0
    %624 = vmatpush1.msra.mxu0 %v428
    %625 = vmatprep.subr.mxu0 0.0
    %626 = vmatpush1.msra.mxu0 %v429
    %627 = vmatprep.subr.mxu0 0.0
    %628 = vmatpush1.msra.mxu0 %v430
    %629 = vmatprep.subr.mxu0 0.0
    %630 = vmatpush1.msra.mxu0 %v431
    %631 = vmatprep.subr.mxu0 0.0
    %632 = vmatpush1.msra.mxu0 %v432
    %633 = vmatprep.subr.mxu0 0.0
    %634 = vmatpush1.msra.mxu0 %v433
    %635 = vmatprep.subr.mxu0 0.0
    %636 = vmatpush1.msra.mxu0 %v434
    %637 = vmatprep.subr.mxu0 0.0
    %638 = vmatpush1.msra.mxu0 %v435
    %639 = vmatprep.subr.mxu0 0.0
    %640 = vmatpush1.msra.mxu0 %v436
    %641 = vmatprep.subr.mxu0 0.0
    %642 = vmatpush1.msra.mxu0 %v437
    %643 = vmatprep.subr.mxu0 0.0
    %644 = vmatpush1.msra.mxu0 %v438
    %645 = vmatprep.subr.mxu0 0.0
    %646 = vmatpush1.msra.mxu0 %v439
    %647 = vmatprep.subr.mxu0 0.0
    %648 = vmatpush1.msra.mxu0 %v440
    %649 = vmatprep.subr.mxu0 0.0
    %650 = vmatpush1.msra.mxu0 %v441
    %651 = vmatprep.subr.mxu0 0.0
    %652 = vmatpush1.msra.mxu0 %v442
    %653 = vmatprep.subr.mxu0 0.0
    %654 = vmatpush1.msra.mxu0 %v443
    %655 = vmatprep.subr.mxu0 0.0
    %656 = vmatpush1.msra.mxu0 0.0
    %657 = vmatprep.subr.mxu0 0.0
    %658 = vmatpush1.msra.mxu0 0.0
    %659 = vmatprep.subr.mxu0 0.0
    %660 = vmatpush1.msra.mxu0 0.0
    %661 = vmatprep.subr.mxu0 0.0
    %662 = vmatpush1.msra.mxu0 0.0
    %663 = vmatprep.subr.mxu0 0.0
    %664 = vmatpush1.msra.mxu0 0.0
    %665 = vmatprep.subr.mxu0 0.0
    %666 = vmatpush1.msra.mxu0 0.0
    %667 = vmatprep.subr.mxu0 0.0
    %668 = vmatpush1.msra.mxu0 0.0
    %669 = vmatprep.subr.mxu0 0.0
    %670 = vmatpush1.msra.mxu0 0.0
    %671 = vmatprep.subr.mxu0 0.0
    %672 = vmatpush1.msra.mxu0 0.0
    %673 = vmatprep.subr.mxu0 0.0
    %674 = vmatpush1.msra.mxu0 0.0
    %675 = vmatprep.subr.mxu0 0.0
    %676 = vmatpush1.msra.mxu0 0.0
    %677 = vmatprep.subr.mxu0 0.0
    %678 = vmatpush1.msra.mxu0 0.0
    %679 = vmatprep.subr.mxu0 0.0
    %680 = vmatpush1.msra.mxu0 0.0
    %681 = vmatprep.subr.mxu0 0.0
    %682 = vmatpush1.msra.mxu0 0.0
    %683 = vmatprep.subr.mxu0 0.0
    %684 = vmatpush1.msra.mxu0 0.0
    %685 = vmatprep.subr.mxu0 0.0
    %686 = vmatpush1.msra.mxu0 0.0
    %687 = vmatprep.mubr.f32.mxu0 0.0
    %688 = vmatmul.mubr.f32.gmra.mrb[0].mxu0 %v618
    %v689 = vpop.f32.mrb[0].mxu0
    %v690 = vadd.f32 %v622, %v689
    %v691 = vpop.f32.mrb[0].mxu0
    %692 = vdwg.mxu0
    %v693 = vmax.f32 %v690, 0.0
    %v694 = vlaneseq
    %v695 = vshrl.u32 %v694, 7
    %v696 = vsub.s32 0, %v695
    %v697 = vrot.slane %v463, %v696
    %698 = vmatprep.subr.mxu0 0.0
    %699 = vmatpush1.msra.mxu0 %v444
    %700 = vmatprep.subr.mxu0 0.0
    %701 = vmatpush1.msra.mxu0 %v445
    %702 = vmatprep.subr.mxu0 0.0
    %703 = vmatpush1.msra.mxu0 %v446
    %704 = vmatprep.subr.mxu0 0.0
    %705 = vmatpush1.msra.mxu0 %v447
    %706 = vmatprep.subr.mxu0 0.0
    %707 = vmatpush1.msra.mxu0 %v448
    %708 = vmatprep.subr.mxu0 0.0
    %709 = vmatpush1.msra.mxu0 %v449
    %710 = vmatprep.subr.mxu0 0.0
    %711 = vmatpush1.msra.mxu0 %v450
    %712 = vmatprep.subr.mxu0 0.0
    %713 = vmatpush1.msra.mxu0 %v451
    %714 = vmatprep.subr.mxu0 0.0
    %715 = vmatpush1.msra.mxu0 %v452
    %716 = vmatprep.subr.mxu0 0.0
    %717 = vmatpush1.msra.mxu0 %v453
    %718 = vmatprep.subr.mxu0 0.0
    %719 = vmatpush1.msra.mxu0 %v454
    %720 = vmatprep.subr.mxu0 0.0
    %721 = vmatpush1.msra.mxu0 %v455
    %722 = vmatprep.subr.mxu0 0.0
    %723 = vmatpush1.msra.mxu0 %v456
    %724 = vmatprep.subr.mxu0 0.0
    %725 = vmatpush1.msra.mxu0 %v457
    %726 = vmatprep.subr.mxu0 0.0
    %727 = vmatpush1.msra.mxu0 %v458
    %728 = vmatprep.subr.mxu0 0.0
    %729 = vmatpush1.msra.mxu0 %v459
    %730 = vmatprep.subr.mxu0 0.0
    %731 = vmatpush1.msra.mxu0 0.0
    %732 = vmatprep.subr.mxu0 0.0
    %733 = vmatpush1.msra.mxu0 0.0
    %734 = vmatprep.subr.mxu0 0.0
    %735 = vmatpush1.msra.mxu0 0.0
    %736 = vmatprep.subr.mxu0 0.0
    %737 = vmatpush1.msra.mxu0 0.0
    %738 = vmatprep.subr.mxu0 0.0
    %739 = vmatpush1.msra.mxu0 0.0
    %740 = vmatprep.subr.mxu0 0.0
    %741 = vmatpush1.msra.mxu0 0.0
    %742 = vmatprep.subr.mxu0 0.0
    %743 = vmatpush1.msra.mxu0 0.0
    %744 = vmatprep.subr.mxu0 0.0
    %745 = vmatpush1.msra.mxu0 0.0
    %746 = vmatprep.subr.mxu0 0.0
    %747 = vmatpush1.msra.mxu0 0.0
    %748 = vmatprep.subr.mxu0 0.0
    %749 = vmatpush1.msra.mxu0 0.0
    %750 = vmatprep.subr.mxu0 0.0
    %751 = vmatpush1.msra.mxu0 0.0
    %752 = vmatprep.subr.mxu0 0.0
    %753 = vmatpush1.msra.mxu0 0.0
    %754 = vmatprep.subr.mxu0 0.0
    %755 = vmatpush1.msra.mxu0 0.0
    %756 = vmatprep.subr.mxu0 0.0
    %757 = vmatpush1.msra.mxu0 0.0
    %758 = vmatprep.subr.mxu0 0.0
    %759 = vmatpush1.msra.mxu0 0.0
    %760 = vmatprep.subr.mxu0 0.0
    %761 = vmatpush1.msra.mxu0 0.0
    %762 = vmatprep.mubr.f32.mxu0 0.0
    %763 = vmatmul.mubr.f32.gmra.mrb[0].mxu0 %v693
    %v764 = vpop.f32.mrb[0].mxu0
    %v765 = vadd.f32 %v697, %v764
    %v766 = vpop.f32.mrb[0].mxu0
    %767 = vdwg.mxu0
    %768 = vadd.xlane.f32.xlu0 %v765
    %v769 = vpop.xlane.xlu0 %768
    %v770 = vsub.f32 %v769, %v765
    %v771 = vmul.f32 %v770, 0.125
    %v772 = vsub.f32 %v765, %v771
    %774 = vset.pattern.permute.xlu0 0
    %775 = vperm.xlu0 %774, %v772
    %v776 = vpop.permute.xlu0 %775
    %v778 = vadd.f32 %v765, %v776
    %779 = vst [vmem:[#allocation7 + $0x8] sm:$0xff] %v778
    // Predicated region
    $region18: #{tpu_custom_call.1} parent=1 // pred_check
      _
    $region19: #{tpu_custom_call.1} parent=1 // pred_check_branch
      %781 = sbr.rel (0) target = $region21
    $region20: #{tpu_custom_call.1} parent=1 // pred_region
      %s783 = ssub.s32 256, 256
      %784 = vsyncadd [#allocation4], %s783
      %s786 = sshll.u32 [#allocation7], 4
      %s787 = int_to_ptr.vmem [resolvable:$true] %s786
      %789 = dma.vmem_to_hbm [thread:$0]  %s787, 256, %s2, [#allocation4]
    $region21: #{tpu_custom_call.1} parent=1 // pred_fallthru
      _
    // Predicated region
    $region22: #{tpu_custom_call.1} parent=1 // pred_check
      _
    $region23: #{tpu_custom_call.1} parent=1 // pred_check_branch
      %791 = sbr.rel (0) target = $region25
    $region24: #{tpu_custom_call.1} parent=1 // pred_region
      %792 = dma.done [#allocation4], 256
    $region25: #{tpu_custom_call.1} parent=1 // pred_fallthru
      _
    %793 = vsyncpa [#allocation3], 1
    %794 = vsyncpa [#allocation6], 1
    %795 = vsyncpa [#allocation4], 1

</llo_original>
